<compile_context>
chip_gen: v5e
topology: v5e:2x2
jax: 0.10.0
libtpu: 0.0.40
codegen_flags: <defaults>
</compile_context>

<pallas_src>
import functools

import jax
import jax.numpy as jnp
from jax.experimental import pallas as pl
from jax.experimental.pallas import tpu as pltpu


def _leaky_relu(x, slope=0.2):
    return jnp.where(x > 0, x, slope * x)


def _band_weight(w, W):
    """HWIO (3, 3, Cin, Cout) conv weight -> (3, W*Cin, W*Cout) banded row-matmul matrices.

    M[ky, wi*Cin+ci, wo*Cout+co] = w[ky, kx, ci, co] with kx = wi - wo + 1 (zero outside the
    band), so that   out_row[h] = sum_ky in_row[h + ky - 1] @ M[ky]   implements the 3x3
    convolution (padding=1) on lane-flattened (W*C) rows; the zero blocks of the band supply
    the W-direction zero padding.
    """
    idx = jnp.arange(W)
    # S[kx, wi, wo] = 1 iff wi == wo + kx - 1
    S = jnp.stack([(idx[:, None] - idx[None, :]) == (kx - 1) for kx in range(3)], axis=0)
    S = S.astype(w.dtype)
    M = jnp.einsum('xio,yxcd->yicod', S, w)            # (3, W, Cin, W, Cout)
    return M.reshape(3, W * w.shape[2], W * w.shape[3])


def _block_diag_shortcut(ws, W):
    """(Cin, Cout) 1x1 weight -> (W*Cin, W*Cout) block-diagonal matrix."""
    eye = jnp.eye(W, dtype=ws.dtype)
    M = jnp.einsum('io,cd->icod', eye, ws)             # (W, Cin, W, Cout)
    return M.reshape(W * ws.shape[0], W * ws.shape[1])


def _shift_down(p):
    """(B, H, C): result[b, h] = p[b, h-1], result[b, 0] = 0 (conv's top zero pad)."""
    return jnp.concatenate([jnp.zeros_like(p[:, :1]), p[:, :-1]], axis=1)


def _shift_up(p):
    """(B, H, C): result[b, h] = p[b, h+1], result[b, H-1] = 0 (conv's bottom zero pad)."""
    return jnp.concatenate([p[:, 1:], jnp.zeros_like(p[:, :1])], axis=1)


def _resnet_block_kernel(learned_shortcut, x_ref, m0_ref, b0_ref, m1_ref, b1_ref, *rest):
    # x_ref  : (B, H, W*Cin)       lane-flattened input rows (f32)
    # m0_ref : (3, W*Cin, W*Chid)  banded conv_0 matrices, one per ky (bf16)
    # b0_ref : (1, W*Chid)         conv_0 bias tiled over W (f32)
    # m1_ref : (3, W*Chid, W*Cout) banded conv_1 matrices (bf16)
    # b1_ref : (1, W*Cout)         conv_1 bias tiled over W (f32)
    # ms_ref : (W*Cin, W*Cout)     block-diagonal 1x1 shortcut (bf16; only if learned)
    # out_ref: (B, H, W*Cout)
    if learned_shortcut:
        ms_ref, out_ref = rest
    else:
        (out_ref,) = rest

    B, H, WCin = x_ref.shape
    WChid = m0_ref.shape[2]
    WCout = m1_ref.shape[2]

    x = x_ref[...]                                               # (B, H, W*Cin) f32
    a = _leaky_relu(x).astype(jnp.bfloat16).reshape(B * H, WCin)

    # conv_0: one full-M matmul per ky tap, then shift the products by the tap offset.
    # Shifts are along H per image (axis=1) with zero fill -> supplies the H zero padding
    # and prevents any cross-image leakage when B > 1.
    p0 = jnp.dot(a, m0_ref[0], preferred_element_type=jnp.float32).reshape(B, H, WChid)
    p1 = jnp.dot(a, m0_ref[1], preferred_element_type=jnp.float32).reshape(B, H, WChid)
    p2 = jnp.dot(a, m0_ref[2], preferred_element_type=jnp.float32).reshape(B, H, WChid)
    acc0 = _shift_down(p0) + p1 + _shift_up(p2) + b0_ref[...]    # (B, H, W*Chid) f32

    h = _leaky_relu(acc0).astype(jnp.bfloat16).reshape(B * H, WChid)

    # conv_1: same structure.
    q0 = jnp.dot(h, m1_ref[0], preferred_element_type=jnp.float32).reshape(B, H, WCout)
    q1 = jnp.dot(h, m1_ref[1], preferred_element_type=jnp.float32).reshape(B, H, WCout)
    q2 = jnp.dot(h, m1_ref[2], preferred_element_type=jnp.float32).reshape(B, H, WCout)
    acc1 = _shift_down(q0) + q1 + _shift_up(q2) + b1_ref[...]    # (B, H, W*Cout) f32

    # Shortcut: bf16 MXU matmul against the block-diagonal 1x1 matrix (f32 accumulate),
    # or the raw f32 input when fin == fout.
    if learned_shortcut:
        x_s = jnp.dot(x.reshape(B * H, WCin).astype(jnp.bfloat16), ms_ref[...],
                      preferred_element_type=jnp.float32).reshape(B, H, WCout)
    else:
        x_s = x                                                  # same flat layout, f32

    out_ref[...] = (x_s + 0.1 * acc1).astype(out_ref.dtype)


def prepare_resnet_block_params(params, W, learned_shortcut):
    """One-time (per parameter set) weight preparation — keep OUT of the forward hot path."""
    w0, b0, w1, b1, ws = params
    Chid = w0.shape[-1]
    Cout = w1.shape[-1]

    m0 = _band_weight(w0, W).astype(jnp.bfloat16)                # (3, W*Cin, W*Chid)
    m1 = _band_weight(w1, W).astype(jnp.bfloat16)                # (3, W*Chid, W*Cout)
    b0r = jnp.tile(b0.astype(jnp.float32), W).reshape(1, W * Chid)
    b1r = jnp.tile(b1.astype(jnp.float32), W).reshape(1, W * Cout)
    ms = _block_diag_shortcut(ws, W).astype(jnp.bfloat16) if learned_shortcut else None

    # Banded weights grow as 3*(W*C)^2 bf16 per conv; keep them well under scoped VMEM
    # (v7x physical VMEM is 64 MiB).  Beyond this, fall back to a channel-padded NHWC conv.
    weight_bytes = m0.size * 2 + m1.size * 2 + (ms.size * 2 if ms is not None else 0)
    assert weight_bytes < 8 * 1024 * 1024, (
        "banded-weight scheme too large for VMEM; use a channel-padded NHWC conv instead")
    return (m0, b0r, m1, b1r, ms)


def resnet_block_forward(x, prepared, learned_shortcut):
    """x: (N, H, W, Cin) float32 NHWC; prepared = prepare_resnet_block_params(...)."""
    m0, b0r, m1, b1r, ms = prepared
    N, H, W, Cin = x.shape
    WCin = W * Cin
    WChid = m0.shape[2]
    WCout = m1.shape[2]
    Cout = WCout // W

    # Batch tile: everything fits trivially in VMEM here, so make tiles as large as possible
    # while keeping >= 2 grid steps when N >= 2 so both v7x TensorCores get work.
    if N >= 2:
        b_tile = 1
        for cand in range(min(N // 2, 32), 0, -1):
            if N % cand == 0:
                b_tile = cand
                break
    else:
        b_tile = N
    grid = (N // b_tile,)

    # Free reshape only — no HBM pad / halo gather before the kernel.
    xr = x.reshape(N, H, WCin)

    kernel = functools.partial(_resnet_block_kernel, learned_shortcut)

    in_specs = [
        pl.BlockSpec((b_tile, H, WCin), lambda n: (n, 0, 0)),
        pl.BlockSpec((3, WCin, WChid), lambda n: (0, 0, 0)),
        pl.BlockSpec((1, WChid), lambda n: (0, 0)),
        pl.BlockSpec((3, WChid, WCout), lambda n: (0, 0, 0)),
        pl.BlockSpec((1, WCout), lambda n: (0, 0)),
    ]
    operands = [xr, m0, b0r, m1, b1r]
    if learned_shortcut:
        in_specs.append(pl.BlockSpec((WCin, WCout), lambda n: (0, 0)))
        operands.append(ms)

    out_flat = pl.pallas_call(
        kernel,
        out_shape=jax.ShapeDtypeStruct((N, H, WCout), x.dtype),
        grid_spec=pltpu.PrefetchScalarGridSpec(
            num_scalar_prefetch=0,
            grid=grid,
            in_specs=in_specs,
            out_specs=pl.BlockSpec((b_tile, H, WCout), lambda n: (n, 0, 0)),
        ),
        compiler_params=pltpu.CompilerParams(
            dimension_semantics=("parallel",),          # shard batch steps across v7x's 2 TCs
            vmem_limit_bytes=32 * 1024 * 1024,          # >= default on v5e/v6e/v7x
        ),
    )(*operands)

    return out_flat.reshape(N, H, W, Cout)


def reference_forward(x, params, learned_shortcut):
    """Pure-JAX reference matching the PyTorch module (NHWC)."""
    w0, b0, w1, b1, ws = params

    def conv3(inp, w, b):
        out = jax.lax.conv_general_dilated(
            inp, w, window_strides=(1, 1), padding='SAME',
            dimension_numbers=('NHWC', 'HWIO', 'NHWC'))
        return out + b.reshape(1, 1, 1, -1)

    if learned_shortcut:
        x_s = jnp.einsum('nhwc,cd->nhwd', x, ws)
    else:
        x_s = x
    dx = conv3(_leaky_relu(x), w0, b0)
    dx = conv3(_leaky_relu(dx), w1, b1)
    return x_s + 0.1 * dx


if __name__ == "__main__":
    key = jax.random.PRNGKey(0)
    N, H, W = 2, 16, 16
    fin, fout = 4, 8                      # fin != fout -> learned shortcut
    fhid = min(fin, fout)                 # fhidden = min(fin, fout)
    learned_shortcut = fin != fout

    ks = jax.random.split(key, 6)
    x = jax.random.normal(ks[0], (N, H, W, fin), jnp.float32)
    w0 = jax.random.normal(ks[1], (3, 3, fin, fhid), jnp.float32) * 0.1
    b0 = jax.random.normal(ks[2], (fhid,), jnp.float32) * 0.1
    w1 = jax.random.normal(ks[3], (3, 3, fhid, fout), jnp.float32) * 0.1
    b1 = jax.random.normal(ks[4], (fout,), jnp.float32) * 0.1
    ws = jax.random.normal(ks[5], (fin, fout), jnp.float32) * 0.1
    params = (w0, b0, w1, b1, ws)

    # One-time weight banding (hoisted out of the forward path).
    prepared = prepare_resnet_block_params(params, W, learned_shortcut)

    out = resnet_block_forward(x, prepared, learned_shortcut)
    out = jax.block_until_ready(out)

    ref = reference_forward(x, params, learned_shortcut)
    assert out.shape == (N, H, W, fout)
    # bf16 MXU inputs on the conv + shortcut paths (f32 accumulate, f32 residual add).
    assert jnp.allclose(out, ref, atol=1e-2, rtol=1e-2), "mismatch vs reference"

    print("KERNEL_OK")
</pallas_src>

<mosaic_0001>
module attributes {stable_mosaic.version = 11 : i64} {
  func.func @_resnet_block_kernel(%arg0: i32, %arg1: memref<1x16x64xf32, #tpu.memory_space<vmem>>, %arg2: memref<3x64x64xbf16, #tpu.memory_space<vmem>>, %arg3: memref<1x64xf32, #tpu.memory_space<vmem>>, %arg4: memref<3x64x128xbf16, #tpu.memory_space<vmem>>, %arg5: memref<1x128xf32, #tpu.memory_space<vmem>>, %arg6: memref<64x128xbf16, #tpu.memory_space<vmem>>, %arg7: memref<1x16x128xf32, #tpu.memory_space<vmem>>) attributes {dimension_semantics = [#tpu.dimension_semantics<parallel>], iteration_bounds = array<i64: 2>, scalar_prefetch = 0 : i64, scratch_operands = 0 : i64, tpu.core_type = #tpu.core_type<tc>, window_params = [{transform_indices = @transform_0, window_bounds = array<i64: 1, 16, 64>}, {pipeline_mode = #tpu.pipeline_mode<synchronous>, transform_indices = @transform_1, window_bounds = array<i64: 3, 64, 64>}, {pipeline_mode = #tpu.pipeline_mode<synchronous>, transform_indices = @transform_2, window_bounds = array<i64: 1, 64>}, {pipeline_mode = #tpu.pipeline_mode<synchronous>, transform_indices = @transform_3, window_bounds = array<i64: 3, 64, 128>}, {pipeline_mode = #tpu.pipeline_mode<synchronous>, transform_indices = @transform_4, window_bounds = array<i64: 1, 128>}, {pipeline_mode = #tpu.pipeline_mode<synchronous>, transform_indices = @transform_5, window_bounds = array<i64: 64, 128>}, {transform_indices = @transform_6, window_bounds = array<i64: 1, 16, 128>}]} {
    %c0 = arith.constant 0 : index
    %c0_0 = arith.constant 0 : index
    %c0_1 = arith.constant 0 : index
    %0 = vector.load %arg1[%c0, %c0_0, %c0_1] : memref<1x16x64xf32, #tpu.memory_space<vmem>>, vector<1x16x64xf32>
    %cst = arith.constant 0.000000e+00 : f32
    %1 = vector.broadcast %cst : f32 to vector<1x16x64xf32>
    %2 = arith.cmpf ogt, %0, %1 : vector<1x16x64xf32>
    %cst_2 = arith.constant 2.000000e-01 : f32
    %3 = vector.broadcast %cst_2 : f32 to vector<1x16x64xf32>
    %4 = arith.mulf %3, %0 : vector<1x16x64xf32>
    %5 = arith.select %2, %0, %4 : vector<1x16x64xi1>, vector<1x16x64xf32>
    %6 = arith.truncf %5 : vector<1x16x64xf32> to vector<1x16x64xbf16>
    %7 = vector.shape_cast %6 : vector<1x16x64xbf16> to vector<16x64xbf16>
    %c0_3 = arith.constant 0 : index
    %c0_4 = arith.constant 0 : index
    %c0_5 = arith.constant 0 : index
    %8 = vector.load %arg2[%c0_3, %c0_4, %c0_5] : memref<3x64x64xbf16, #tpu.memory_space<vmem>>, vector<1x64x64xbf16>
    %9 = vector.shape_cast %8 : vector<1x64x64xbf16> to vector<64x64xbf16>
    %cst_6 = arith.constant dense<0.000000e+00> : vector<16x64xf32>
    %10 = tpu.matmul %7, %9, %cst_6 {dimension_numbers = #tpu.dot_dimension_numbers<[1], [0], [0], [1], [0, 0, 1, 1], [], []>} : vector<16x64xbf16>, vector<64x64xbf16>, vector<16x64xf32> -> vector<16x64xf32>
    %11 = vector.shape_cast %10 : vector<16x64xf32> to vector<1x16x64xf32>
    %c1 = arith.constant 1 : index
    %c0_7 = arith.constant 0 : index
    %c0_8 = arith.constant 0 : index
    %12 = vector.load %arg2[%c1, %c0_7, %c0_8] : memref<3x64x64xbf16, #tpu.memory_space<vmem>>, vector<1x64x64xbf16>
    %13 = vector.shape_cast %12 : vector<1x64x64xbf16> to vector<64x64xbf16>
    %cst_9 = arith.constant dense<0.000000e+00> : vector<16x64xf32>
    %14 = tpu.matmul %7, %13, %cst_9 {dimension_numbers = #tpu.dot_dimension_numbers<[1], [0], [0], [1], [0, 0, 1, 1], [], []>} : vector<16x64xbf16>, vector<64x64xbf16>, vector<16x64xf32> -> vector<16x64xf32>
    %15 = vector.shape_cast %14 : vector<16x64xf32> to vector<1x16x64xf32>
    %c2 = arith.constant 2 : index
    %c0_10 = arith.constant 0 : index
    %c0_11 = arith.constant 0 : index
    %16 = vector.load %arg2[%c2, %c0_10, %c0_11] : memref<3x64x64xbf16, #tpu.memory_space<vmem>>, vector<1x64x64xbf16>
    %17 = vector.shape_cast %16 : vector<1x64x64xbf16> to vector<64x64xbf16>
    %cst_12 = arith.constant dense<0.000000e+00> : vector<16x64xf32>
    %18 = tpu.matmul %7, %17, %cst_12 {dimension_numbers = #tpu.dot_dimension_numbers<[1], [0], [0], [1], [0, 0, 1, 1], [], []>} : vector<16x64xbf16>, vector<64x64xbf16>, vector<16x64xf32> -> vector<16x64xf32>
    %19 = vector.shape_cast %18 : vector<16x64xf32> to vector<1x16x64xf32>
    %cst_13 = arith.constant 0.000000e+00 : f32
    %20 = vector.broadcast %cst_13 : f32 to vector<1x1x64xf32>
    %21 = vector.extract_strided_slice %11 {offsets = [0, 0, 0], sizes = [1, 15, 64], strides = [1, 1, 1]} : vector<1x16x64xf32> to vector<1x15x64xf32>
    %22 = tpu.concatenate %20, %21 in 1 : vector<1x1x64xf32>, vector<1x15x64xf32> -> vector<1x16x64xf32>
    %23 = arith.addf %22, %15 : vector<1x16x64xf32>
    %24 = vector.extract_strided_slice %19 {offsets = [0, 1, 0], sizes = [1, 15, 64], strides = [1, 1, 1]} : vector<1x16x64xf32> to vector<1x15x64xf32>
    %cst_14 = arith.constant 0.000000e+00 : f32
    %25 = vector.broadcast %cst_14 : f32 to vector<1x1x64xf32>
    %26 = tpu.concatenate %24, %25 in 1 : vector<1x15x64xf32>, vector<1x1x64xf32> -> vector<1x16x64xf32>
    %27 = arith.addf %23, %26 : vector<1x16x64xf32>
    %c0_15 = arith.constant 0 : index
    %c0_16 = arith.constant 0 : index
    %28 = vector.load %arg3[%c0_15, %c0_16] : memref<1x64xf32, #tpu.memory_space<vmem>>, vector<1x64xf32>
    %29 = vector.shape_cast %28 : vector<1x64xf32> to vector<1x1x64xf32>
    %30 = vector.broadcast %29 : vector<1x1x64xf32> to vector<1x16x64xf32>
    %31 = arith.addf %27, %30 : vector<1x16x64xf32>
    %cst_17 = arith.constant 0.000000e+00 : f32
    %32 = vector.broadcast %cst_17 : f32 to vector<1x16x64xf32>
    %33 = arith.cmpf ogt, %31, %32 : vector<1x16x64xf32>
    %cst_18 = arith.constant 2.000000e-01 : f32
    %34 = vector.broadcast %cst_18 : f32 to vector<1x16x64xf32>
    %35 = arith.mulf %34, %31 : vector<1x16x64xf32>
    %36 = arith.select %33, %31, %35 : vector<1x16x64xi1>, vector<1x16x64xf32>
    %37 = arith.truncf %36 : vector<1x16x64xf32> to vector<1x16x64xbf16>
    %38 = vector.shape_cast %37 : vector<1x16x64xbf16> to vector<16x64xbf16>
    %c0_19 = arith.constant 0 : index
    %c0_20 = arith.constant 0 : index
    %c0_21 = arith.constant 0 : index
    %39 = vector.load %arg4[%c0_19, %c0_20, %c0_21] : memref<3x64x128xbf16, #tpu.memory_space<vmem>>, vector<1x64x128xbf16>
    %40 = vector.shape_cast %39 : vector<1x64x128xbf16> to vector<64x128xbf16>
    %cst_22 = arith.constant dense<0.000000e+00> : vector<16x128xf32>
    %41 = tpu.matmul %38, %40, %cst_22 {dimension_numbers = #tpu.dot_dimension_numbers<[1], [0], [0], [1], [0, 0, 1, 1], [], []>} : vector<16x64xbf16>, vector<64x128xbf16>, vector<16x128xf32> -> vector<16x128xf32>
    %42 = vector.shape_cast %41 : vector<16x128xf32> to vector<1x16x128xf32>
    %c1_23 = arith.constant 1 : index
    %c0_24 = arith.constant 0 : index
    %c0_25 = arith.constant 0 : index
    %43 = vector.load %arg4[%c1_23, %c0_24, %c0_25] : memref<3x64x128xbf16, #tpu.memory_space<vmem>>, vector<1x64x128xbf16>
    %44 = vector.shape_cast %43 : vector<1x64x128xbf16> to vector<64x128xbf16>
    %cst_26 = arith.constant dense<0.000000e+00> : vector<16x128xf32>
    %45 = tpu.matmul %38, %44, %cst_26 {dimension_numbers = #tpu.dot_dimension_numbers<[1], [0], [0], [1], [0, 0, 1, 1], [], []>} : vector<16x64xbf16>, vector<64x128xbf16>, vector<16x128xf32> -> vector<16x128xf32>
    %46 = vector.shape_cast %45 : vector<16x128xf32> to vector<1x16x128xf32>
    %c2_27 = arith.constant 2 : index
    %c0_28 = arith.constant 0 : index
    %c0_29 = arith.constant 0 : index
    %47 = vector.load %arg4[%c2_27, %c0_28, %c0_29] : memref<3x64x128xbf16, #tpu.memory_space<vmem>>, vector<1x64x128xbf16>
    %48 = vector.shape_cast %47 : vector<1x64x128xbf16> to vector<64x128xbf16>
    %cst_30 = arith.constant dense<0.000000e+00> : vector<16x128xf32>
    %49 = tpu.matmul %38, %48, %cst_30 {dimension_numbers = #tpu.dot_dimension_numbers<[1], [0], [0], [1], [0, 0, 1, 1], [], []>} : vector<16x64xbf16>, vector<64x128xbf16>, vector<16x128xf32> -> vector<16x128xf32>
    %50 = vector.shape_cast %49 : vector<16x128xf32> to vector<1x16x128xf32>
    %cst_31 = arith.constant 0.000000e+00 : f32
    %51 = vector.broadcast %cst_31 : f32 to vector<1x1x128xf32>
    %52 = vector.extract_strided_slice %42 {offsets = [0, 0, 0], sizes = [1, 15, 128], strides = [1, 1, 1]} : vector<1x16x128xf32> to vector<1x15x128xf32>
    %53 = tpu.concatenate %51, %52 in 1 : vector<1x1x128xf32>, vector<1x15x128xf32> -> vector<1x16x128xf32>
    %54 = arith.addf %53, %46 : vector<1x16x128xf32>
    %55 = vector.extract_strided_slice %50 {offsets = [0, 1, 0], sizes = [1, 15, 128], strides = [1, 1, 1]} : vector<1x16x128xf32> to vector<1x15x128xf32>
    %cst_32 = arith.constant 0.000000e+00 : f32
    %56 = vector.broadcast %cst_32 : f32 to vector<1x1x128xf32>
    %57 = tpu.concatenate %55, %56 in 1 : vector<1x15x128xf32>, vector<1x1x128xf32> -> vector<1x16x128xf32>
    %58 = arith.addf %54, %57 : vector<1x16x128xf32>
    %c0_33 = arith.constant 0 : index
    %c0_34 = arith.constant 0 : index
    %59 = vector.load %arg5[%c0_33, %c0_34] : memref<1x128xf32, #tpu.memory_space<vmem>>, vector<1x128xf32>
    %60 = vector.shape_cast %59 : vector<1x128xf32> to vector<1x1x128xf32>
    %61 = vector.broadcast %60 : vector<1x1x128xf32> to vector<1x16x128xf32>
    %62 = arith.addf %58, %61 : vector<1x16x128xf32>
    %63 = vector.shape_cast %0 : vector<1x16x64xf32> to vector<16x64xf32>
    %64 = arith.truncf %63 : vector<16x64xf32> to vector<16x64xbf16>
    %c0_35 = arith.constant 0 : index
    %c0_36 = arith.constant 0 : index
    %65 = vector.load %arg6[%c0_35, %c0_36] : memref<64x128xbf16, #tpu.memory_space<vmem>>, vector<64x128xbf16>
    %cst_37 = arith.constant dense<0.000000e+00> : vector<16x128xf32>
    %66 = tpu.matmul %64, %65, %cst_37 {dimension_numbers = #tpu.dot_dimension_numbers<[1], [0], [0], [1], [0, 0, 1, 1], [], []>} : vector<16x64xbf16>, vector<64x128xbf16>, vector<16x128xf32> -> vector<16x128xf32>
    %67 = vector.shape_cast %66 : vector<16x128xf32> to vector<1x16x128xf32>
    %cst_38 = arith.constant 1.000000e-01 : f32
    %68 = vector.broadcast %cst_38 : f32 to vector<1x16x128xf32>
    %69 = arith.mulf %68, %62 : vector<1x16x128xf32>
    %70 = arith.addf %67, %69 : vector<1x16x128xf32>
    %c0_39 = arith.constant 0 : index
    %c0_40 = arith.constant 0 : index
    %c0_41 = arith.constant 0 : index
    %71 = vector.load %arg7[%c0_39, %c0_40, %c0_41] : memref<1x16x128xf32, #tpu.memory_space<vmem>>, vector<1x16x128xf32>
    tpu.vector_store %arg7[%c0_39, %c0_40, %c0_41], %70 {strides = array<i32>} : memref<1x16x128xf32, #tpu.memory_space<vmem>>, vector<1x16x128xf32>,
    return
  }
  func.func @transform_0(%arg0: i32) -> (i32, i32, i32) {
    %c0_i32 = arith.constant 0 : i32
    %c0_i32_0 = arith.constant 0 : i32
    %c0_i32_1 = arith.constant 0 : i32
    return %arg0, %c0_i32, %c0_i32_0 : i32, i32, i32
  }
  func.func @transform_1(%arg0: i32) -> (i32, i32, i32) {
    %c0_i32 = arith.constant 0 : i32
    %c0_i32_0 = arith.constant 0 : i32
    %c0_i32_1 = arith.constant 0 : i32
    %c0_i32_2 = arith.constant 0 : i32
    return %c0_i32, %c0_i32_0, %c0_i32_1 : i32, i32, i32
  }
  func.func @transform_2(%arg0: i32) -> (i32, i32) {
    %c0_i32 = arith.constant 0 : i32
    %c0_i32_0 = arith.constant 0 : i32
    %c0_i32_1 = arith.constant 0 : i32
    return %c0_i32, %c0_i32_0 : i32, i32
  }
  func.func @transform_3(%arg0: i32) -> (i32, i32, i32) {
    %c0_i32 = arith.constant 0 : i32
    %c0_i32_0 = arith.constant 0 : i32
    %c0_i32_1 = arith.constant 0 : i32
    %c0_i32_2 = arith.constant 0 : i32
    return %c0_i32, %c0_i32_0, %c0_i32_1 : i32, i32, i32
  }
  func.func @transform_4(%arg0: i32) -> (i32, i32) {
    %c0_i32 = arith.constant 0 : i32
    %c0_i32_0 = arith.constant 0 : i32
    %c0_i32_1 = arith.constant 0 : i32
    return %c0_i32, %c0_i32_0 : i32, i32
  }
  func.func @transform_5(%arg0: i32) -> (i32, i32) {
    %c0_i32 = arith.constant 0 : i32
    %c0_i32_0 = arith.constant 0 : i32
    %c0_i32_1 = arith.constant 0 : i32
    return %c0_i32, %c0_i32_0 : i32, i32
  }
  func.func @transform_6(%arg0: i32) -> (i32, i32, i32) {
    %c0_i32 = arith.constant 0 : i32
    %c0_i32_0 = arith.constant 0 : i32
    %c0_i32_1 = arith.constant 0 : i32
    return %arg0, %c0_i32, %c0_i32_0 : i32, i32, i32
  }
}

</mosaic_0001>

<llo_original>
// kernel: tpu_custom_call.1
$region0: #{tpu_custom_call.1}
  #allocation0 [shape = 'u32[]', space=smem, size = 0x4, offset = 0x4, fixed_abs, tag = 'smem constant byte address 0x4 - core index']
  #allocation1 [shape = 'u32[72,128]{1,0:T(1,128)}', space=vmem, size = 0x9000, scoped, tag = 'internal scratch']
  %s0 = inlined_call_operand.hbm [shape: f32[2,16,64], index: 0, kind: input, shape index: {}]
  %s1 = inlined_call_operand.hbm [shape: bf16[3,64,64], index: 1, kind: input, shape index: {}]
  %s2 = inlined_call_operand.vmem [shape: f32[1,64], index: 2, kind: input, shape index: {}]
  %s3 = inlined_call_operand.hbm [shape: bf16[3,64,128], index: 3, kind: input, shape index: {}]
  %s4 = inlined_call_operand.vmem [shape: f32[1,128], index: 4, kind: input, shape index: {}]
  %s5 = inlined_call_operand.hbm [shape: bf16[64,128], index: 5, kind: input, shape index: {}]
  %s6 = inlined_call_operand.hbm [shape: f32[2,16,128], index: 6, kind: output, shape index: {}]
  %s7 = sld [smem:[#allocation0]]
  $region73: #{tpu_custom_call.1} parent=0
    _
  %s9 = ssub.s32 1, %s7
  %s10 = scalar_select 0, %s9, %s7
  $region1: #{tpu_custom_call.1} parent=0
    #allocation2 [shape = 'u8[16384]{0}', space=vmem, size = 0x4000, scoped, tag = 'input window, operand 0']
    #allocation3 [shape = 's32[2]{0}', space=sflag, size = 0x8, scoped, tag = 'scoped memory for tpu_custom_call.1']
    #allocation4 [shape = 's32[2]{0}', space=sflag, size = 0x8, scoped, tag = 'scoped memory for tpu_custom_call.1']
    #allocation5 [shape = 'u8[49152]{0}', space=vmem, size = 0xc000, scoped, tag = 'input window, operand 1, single buffered']
    #allocation6 [shape = 's32[1]{0}', space=sflag, size = 0x4, scoped, tag = 'scoped memory for tpu_custom_call.1']
    #allocation7 [shape = 'u8[49152]{0}', space=vmem, size = 0xc000, scoped, tag = 'input window, operand 3, single buffered']
    #allocation8 [shape = 'u8[16384]{0}', space=vmem, size = 0x4000, scoped, tag = 'input window, operand 5, single buffered']
    #allocation9 [shape = 's32[1]{0}', space=sflag, size = 0x4, scoped, tag = 'scoped memory for tpu_custom_call.1']
    #allocation10 [shape = 'u8[16384]{0}', space=vmem, size = 0x4000, scoped, tag = 'output window, operand 0']
    %11 = vsyncpa [#allocation3], 0
    %s12 = scalar_lea.sflag [#allocation3], 1
    %13 = vsyncpa %s12, 0
    %14 = vsyncpa [#allocation6], 0
    %15 = vsyncpa [#allocation9], 0
    %16 = vsyncpa [#allocation4], 0
    %s17 = scalar_lea.sflag [#allocation4], 1
    %18 = vsyncpa %s17, 0
    loop: start=0, step=1, limit=4
    $region2: #{tpu_custom_call.1} parent=1 // loop_pre_header
      _
    $region3: #{tpu_custom_call.1} parent=1 // loop_header
      %s20 = sphi 0, %s24
      %p21 = scmp.ge.s32.totalorder %s20, 4
      %s30 = sphi 0, %s32
      %s33 = sphi 0, %s30
      %s34 = sphi 0, %s33
      %s50 = sphi 0, %s34
      %s54 = sphi 0, %s54
      %s56 = sphi 0, %s54
      %s57 = sphi 0, %s56
      %s71 = sphi 0, %s57
      %s75 = sphi 0, %s75
      %s77 = sphi 0, %s75
      %s78 = sphi 0, %s77
      %s92 = sphi 0, %s78
      %s96 = sphi 0, %s96
      %s98 = sphi 0, %s96
      %s99 = sphi 0, %s98
      %s113 = sphi 0, %s99
      %s117 = sphi 0, %s117
      %s119 = sphi 0, %s117
      %s120 = sphi 0, %s119
      %s134 = sphi 0, %s120
      %s138 = sphi 0, %s138
      %s140 = sphi 0, %s138
      %s141 = sphi 0, %s140
      %s155 = sphi 0, %s141
      %s161 = sphi 0, %s163
      %s164 = sphi 0, %s161
      %s165 = sphi 0, %s164
      %s181 = sphi 0, %s165
    $region4: #{tpu_custom_call.1} parent=1 // loop_header_branch
      %23 = sbr.rel (%p21) target = $region8
    $region5: #{tpu_custom_call.1} parent=1 // loop_body
      %s25 = ssub.s32 %s20, 1
      %s26 = ssub.s32 %s20, 2
      %s27 = sadd.s32 %s20, 1
      %s28 = ssub.s32 %s20, %s27
      %p29 = scmp.eq.s32.totalorder %s28, 0
      %s31 = sadd.s32 %s30, 1
      %s32 = scalar_select %p29, %s30, %s31
      %p35 = pneg %p29
      %p36 = scmp.eq.s32.totalorder %s20, 1
      %p37 = por %p35, %p36
      %p38 = scmp.ne.s32.totalorder %s30, %s33
      %p39 = scmp.eq.s32.totalorder %s20, 0
      %p40 = por %p38, %p39
      %p41 = scmp.ne.s32.totalorder %s30, %s33
      %p42 = scmp.eq.s32.totalorder %s25, 1
      %p43 = por %p41, %p42
      %p44 = scmp.ne.s32.totalorder %s33, %s34
      %p45 = scmp.eq.s32.totalorder %s25, 0
      %p46 = por %p44, %p45
      %p47 = scmp.ne.s32.totalorder %s33, %s34
      %p48 = scmp.eq.s32.totalorder %s26, 1
      %p49 = por %p47, %p48
      %p51 = scmp.ne.s32.totalorder %s34, %s50
      %p52 = scmp.eq.s32.totalorder %s26, 0
      %p53 = por %p51, %p52
      %s55 = sadd.s32 %s54, 1
      %p58 = scmp.eq.s32.totalorder %s20, 1
      %p59 = scmp.ne.s32.totalorder %s54, %s56
      %p60 = scmp.eq.s32.totalorder %s20, 0
      %p61 = por %p59, %p60
      %p62 = scmp.ne.s32.totalorder %s54, %s56
      %p63 = scmp.eq.s32.totalorder %s25, 1
      %p64 = por %p62, %p63
      %p65 = scmp.ne.s32.totalorder %s56, %s57
      %p66 = scmp.eq.s32.totalorder %s25, 0
      %p67 = por %p65, %p66
      %p68 = scmp.ne.s32.totalorder %s56, %s57
      %p69 = scmp.eq.s32.totalorder %s26, 1
      %p70 = por %p68, %p69
      %p72 = scmp.ne.s32.totalorder %s57, %s71
      %p73 = scmp.eq.s32.totalorder %s26, 0
      %p74 = por %p72, %p73
      %s76 = sadd.s32 %s75, 1
      %p79 = scmp.eq.s32.totalorder %s20, 1
      %p80 = scmp.ne.s32.totalorder %s75, %s77
      %p81 = scmp.eq.s32.totalorder %s20, 0
      %p82 = por %p80, %p81
      %p83 = scmp.ne.s32.totalorder %s75, %s77
      %p84 = scmp.eq.s32.totalorder %s25, 1
      %p85 = por %p83, %p84
      %p86 = scmp.ne.s32.totalorder %s77, %s78
      %p87 = scmp.eq.s32.totalorder %s25, 0
      %p88 = por %p86, %p87
      %p89 = scmp.ne.s32.totalorder %s77, %s78
      %p90 = scmp.eq.s32.totalorder %s26, 1
      %p91 = por %p89, %p90
      %p93 = scmp.ne.s32.totalorder %s78, %s92
      %p94 = scmp.eq.s32.totalorder %s26, 0
      %p95 = por %p93, %p94
      %s97 = sadd.s32 %s96, 1
      %p100 = scmp.eq.s32.totalorder %s20, 1
      %p101 = scmp.ne.s32.totalorder %s96, %s98
      %p102 = scmp.eq.s32.totalorder %s20, 0
      %p103 = por %p101, %p102
      %p104 = scmp.ne.s32.totalorder %s96, %s98
      %p105 = scmp.eq.s32.totalorder %s25, 1
      %p106 = por %p104, %p105
      %p107 = scmp.ne.s32.totalorder %s98, %s99
      %p108 = scmp.eq.s32.totalorder %s25, 0
      %p109 = por %p107, %p108
      %p110 = scmp.ne.s32.totalorder %s98, %s99
      %p111 = scmp.eq.s32.totalorder %s26, 1
      %p112 = por %p110, %p111
      %p114 = scmp.ne.s32.totalorder %s99, %s113
      %p115 = scmp.eq.s32.totalorder %s26, 0
      %p116 = por %p114, %p115
      %s118 = sadd.s32 %s117, 1
      %p121 = scmp.eq.s32.totalorder %s20, 1
      %p122 = scmp.ne.s32.totalorder %s117, %s119
      %p123 = scmp.eq.s32.totalorder %s20, 0
      %p124 = por %p122, %p123
      %p125 = scmp.ne.s32.totalorder %s117, %s119
      %p126 = scmp.eq.s32.totalorder %s25, 1
      %p127 = por %p125, %p126
      %p128 = scmp.ne.s32.totalorder %s119, %s120
      %p129 = scmp.eq.s32.totalorder %s25, 0
      %p130 = por %p128, %p129
      %p131 = scmp.ne.s32.totalorder %s119, %s120
      %p132 = scmp.eq.s32.totalorder %s26, 1
      %p133 = por %p131, %p132
      %p135 = scmp.ne.s32.totalorder %s120, %s134
      %p136 = scmp.eq.s32.totalorder %s26, 0
      %p137 = por %p135, %p136
      %s139 = sadd.s32 %s138, 1
      %p142 = scmp.eq.s32.totalorder %s20, 1
      %p143 = scmp.ne.s32.totalorder %s138, %s140
      %p144 = scmp.eq.s32.totalorder %s20, 0
      %p145 = por %p143, %p144
      %p146 = scmp.ne.s32.totalorder %s138, %s140
      %p147 = scmp.eq.s32.totalorder %s25, 1
      %p148 = por %p146, %p147
      %p149 = scmp.ne.s32.totalorder %s140, %s141
      %p150 = scmp.eq.s32.totalorder %s25, 0
      %p151 = por %p149, %p150
      %p152 = scmp.ne.s32.totalorder %s140, %s141
      %p153 = scmp.eq.s32.totalorder %s26, 1
      %p154 = por %p152, %p153
      %p156 = scmp.ne.s32.totalorder %s141, %s155
      %p157 = scmp.eq.s32.totalorder %s26, 0
      %p158 = por %p156, %p157
      %s159 = ssub.s32 %s20, %s27
      %p160 = scmp.eq.s32.totalorder %s159, 0
      %s162 = sadd.s32 %s161, 1
      %s163 = scalar_select %p160, %s161, %s162
      %p166 = pneg %p160
      %p167 = scmp.eq.s32.totalorder %s20, 1
      %p168 = por %p166, %p167
      %p169 = scmp.ne.s32.totalorder %s161, %s164
      %p170 = scmp.eq.s32.totalorder %s20, 0
      %p171 = por %p169, %p170
      %p172 = scmp.ne.s32.totalorder %s161, %s164
      %p173 = scmp.eq.s32.totalorder %s25, 1
      %p174 = por %p172, %p173
      %p175 = scmp.ne.s32.totalorder %s164, %s165
      %p176 = scmp.eq.s32.totalorder %s25, 0
      %p177 = por %p175, %p176
      %p178 = scmp.ne.s32.totalorder %s164, %s165
      %p179 = scmp.eq.s32.totalorder %s26, 1
      %p180 = por %p178, %p179
      %p182 = scmp.ne.s32.totalorder %s165, %s181
      %p183 = scmp.eq.s32.totalorder %s26, 0
      %p184 = por %p182, %p183
      %p185 = scmp.le.s32.totalorder 1, %s20
      %p186 = scmp.lt.s32.totalorder %s20, 3
      %p187 = pnand %p185, %p186
      %p188 = pneg %p187
      // Predicated region
      $region9: #{tpu_custom_call.1} parent=5 // pred_check
        _
      $region10: #{tpu_custom_call.1} parent=5 // pred_check_branch
        %190 = sbr.rel (%p187) target = $region12
      $region11: #{tpu_custom_call.1} parent=5 // pred_region
        %s191 = ssub.s32 %s20, 1
        // Predicated region
        $region13: #{tpu_custom_call.1} parent=11 // pred_check
          %p192 = pneg %p67
        $region14: #{tpu_custom_call.1} parent=11 // pred_check_branch
          %194 = sbr.rel (%p192) target = $region16
        $region15: #{tpu_custom_call.1} parent=11 // pred_region
          %196 = vsyncadd [#allocation6], 0
          %s197 = sshll.u32 %s1, 4
          %s198 = int_to_ptr.hbm [resolvable:$true] %s197
          %s199 = sshll.u32 [#allocation5], 4
          %s200 = int_to_ptr.vmem [resolvable:$true] %s199
          %205 = dma.hbm_to_vmem [thread:$0]  %s198, 1536, %s200, [#allocation6], 64, 64, 4
        $region16: #{tpu_custom_call.1} parent=11 // pred_fallthru
          _
        // Predicated region
        $region17: #{tpu_custom_call.1} parent=11 // pred_check
          %p206 = pneg %p88
        $region18: #{tpu_custom_call.1} parent=11 // pred_check_branch
          %208 = sbr.rel (%p206) target = $region20
        $region19: #{tpu_custom_call.1} parent=11 // pred_region
          _
        $region20: #{tpu_custom_call.1} parent=11 // pred_fallthru
          _
        // Predicated region
        $region21: #{tpu_custom_call.1} parent=11 // pred_check
          %p209 = pneg %p109
        $region22: #{tpu_custom_call.1} parent=11 // pred_check_branch
          %211 = sbr.rel (%p209) target = $region24
        $region23: #{tpu_custom_call.1} parent=11 // pred_region
          %213 = vsyncadd [#allocation6], 0
          %s214 = sshll.u32 %s3, 4
          %s215 = int_to_ptr.hbm [resolvable:$true] %s214
          %s216 = sshll.u32 [#allocation7], 4
          %s217 = int_to_ptr.vmem [resolvable:$true] %s216
          %222 = dma.hbm_to_vmem [thread:$0]  %s215, 1536, %s217, [#allocation6], 64, 64, 4
        $region24: #{tpu_custom_call.1} parent=11 // pred_fallthru
          _
        // Predicated region
        $region25: #{tpu_custom_call.1} parent=11 // pred_check
          %p223 = pneg %p130
        $region26: #{tpu_custom_call.1} parent=11 // pred_check_branch
          %225 = sbr.rel (%p223) target = $region28
        $region27: #{tpu_custom_call.1} parent=11 // pred_region
          _
        $region28: #{tpu_custom_call.1} parent=11 // pred_fallthru
          _
        // Predicated region
        $region29: #{tpu_custom_call.1} parent=11 // pred_check
          %p226 = pneg %p151
        $region30: #{tpu_custom_call.1} parent=11 // pred_check_branch
          %228 = sbr.rel (%p226) target = $region32
        $region31: #{tpu_custom_call.1} parent=11 // pred_region
          %230 = vsyncadd [#allocation9], 0
          %s231 = sshll.u32 %s5, 4
          %s232 = int_to_ptr.hbm [resolvable:$true] %s231
          %s233 = sshll.u32 [#allocation8], 4
          %s234 = int_to_ptr.vmem [resolvable:$true] %s233
          %239 = dma.hbm_to_vmem [thread:$0]  %s232, 512, %s234, [#allocation9], 64, 64, 4
        $region32: #{tpu_custom_call.1} parent=11 // pred_fallthru
          _
      $region12: #{tpu_custom_call.1} parent=5 // pred_fallthru
        _
      %p240 = scmp.lt.s32.totalorder %s20, 2
      // Predicated region
      $region33: #{tpu_custom_call.1} parent=5 // pred_check
        %p241 = pneg %p240
      $region34: #{tpu_custom_call.1} parent=5 // pred_check_branch
        %243 = sbr.rel (%p241) target = $region36
      $region35: #{tpu_custom_call.1} parent=5 // pred_region
        // Predicated region
        $region37: #{tpu_custom_call.1} parent=35 // pred_check
          %p244 = pneg %p40
        $region38: #{tpu_custom_call.1} parent=35 // pred_check_branch
          %246 = sbr.rel (%p244) target = $region40
        $region39: #{tpu_custom_call.1} parent=35 // pred_region
          %s247 = sand.u32 %s30, 1
          %s248 = scalar_lea.sflag [#allocation3], %s247
          %s249 = sand.u32 %s30, 1
          %s250 = smul.addr %s249, 16
          %s251 = scalar_lea.vmem [#allocation2], %s250
          %253 = vsyncadd %s248, 0
          %s254 = smul.addr %s20, 2
          %s255 = smul.addr %s254, 8
          %s256 = scalar_lea.hbm %s0, %s255
          %s257 = sshll.u32 %s256, 4
          %s258 = int_to_ptr.hbm [resolvable:$true] %s257
          %s259 = sshll.u32 %s251, 4
          %s260 = int_to_ptr.vmem [resolvable:$true] %s259
          %265 = dma.hbm_to_vmem [thread:$0]  %s258, 256, %s260, %s248, 128, 128, 8
        $region40: #{tpu_custom_call.1} parent=35 // pred_fallthru
          _
      $region36: #{tpu_custom_call.1} parent=5 // pred_fallthru
        _
      %p266 = scmp.le.s32.totalorder 1, %s20
      %p267 = scmp.lt.s32.totalorder %s20, 3
      %p268 = pnand %p266, %p267
      %p269 = pneg %p268
      // Predicated region
      $region41: #{tpu_custom_call.1} parent=5 // pred_check
        _
      $region42: #{tpu_custom_call.1} parent=5 // pred_check_branch
        %271 = sbr.rel (%p268) target = $region44
      $region43: #{tpu_custom_call.1} parent=5 // pred_region
        %s272 = ssub.s32 %s20, 1
        %s273 = sand.u32 %s33, 1
        %s274 = scalar_lea.sflag [#allocation3], %s273
        %s275 = sand.u32 %s33, 1
        %s276 = smul.addr %s275, 16
        %s277 = scalar_lea.vmem [#allocation2], %s276
        // Predicated region
        $region45: #{tpu_custom_call.1} parent=43 // pred_check
          %p278 = pneg %p46
        $region46: #{tpu_custom_call.1} parent=43 // pred_check_branch
          %280 = sbr.rel (%p278) target = $region48
        $region47: #{tpu_custom_call.1} parent=43 // pred_region
          %282 = dma.done %s274, 256
        $region48: #{tpu_custom_call.1} parent=43 // pred_fallthru
          _
        // Predicated region
        $region49: #{tpu_custom_call.1} parent=43 // pred_check
          %p283 = pneg %p67
        $region50: #{tpu_custom_call.1} parent=43 // pred_check_branch
          %285 = sbr.rel (%p283) target = $region52
        $region51: #{tpu_custom_call.1} parent=43 // pred_region
          %287 = dma.done [#allocation6], 1536
        $region52: #{tpu_custom_call.1} parent=43 // pred_fallthru
          _
        // Predicated region
        $region53: #{tpu_custom_call.1} parent=43 // pred_check
          %p288 = pneg %p109
        $region54: #{tpu_custom_call.1} parent=43 // pred_check_branch
          %290 = sbr.rel (%p288) target = $region56
        $region55: #{tpu_custom_call.1} parent=43 // pred_region
          %292 = dma.done [#allocation6], 1536
        $region56: #{tpu_custom_call.1} parent=43 // pred_fallthru
          _
        // Predicated region
        $region57: #{tpu_custom_call.1} parent=43 // pred_check
          %p293 = pneg %p151
        $region58: #{tpu_custom_call.1} parent=43 // pred_check_branch
          %295 = sbr.rel (%p293) target = $region60
        $region59: #{tpu_custom_call.1} parent=43 // pred_region
          %297 = dma.done [#allocation9], 512
        $region60: #{tpu_custom_call.1} parent=43 // pred_fallthru
          _
        %s298 = sand.u32 %s33, 1
        %s299 = scalar_lea.sflag [#allocation3], %s298
        %s300 = sand.u32 %s33, 1
        %s301 = smul.addr %s300, 16
        %s302 = scalar_lea.vmem [#allocation2], %s301
        %p303 = pneg %p46
        %p304 = pneg %p43
        %p305 = pneg %p67
        %p306 = pneg %p64
        %p307 = pneg %p88
        %p308 = pneg %p85
        %p309 = pneg %p109
        %p310 = pneg %p106
        %p311 = pneg %p130
        %p312 = pneg %p127
        %p313 = pneg %p151
        %p314 = pneg %p148
        %p315 = pneg %p177
        %p316 = pneg %p174
        %s317 = sand.u32 %s164, 1
        %s318 = scalar_lea.sflag [#allocation4], %s317
        %s319 = sand.u32 %s164, 1
        %s320 = smul.addr %s319, 16
        %s321 = scalar_lea.vmem [#allocation10], %s320
        %v323 = vld [vmem:[%s277] sm:$0xff]
        %v324 = vld [vmem:[%s277 + $0x8] sm:$0xff]
        %vm325 = vcmp.gt.f32.partialorder %v323, 0.0
        %vm326 = vcmp.gt.f32.partialorder %v324, 0.0
        %v327 = vmul.f32 %v323, 0.2
        %v328 = vmul.f32 %v324, 0.2
        %v329 = vsel %vm325, %v323, %v327
        %v330 = vsel %vm326, %v324, %v328
        %v331 = vpack.c.bf16 %v329, %v329
        %v332 = vpack.c.bf16 %v330, %v330
        %v333 = vld [vmem:[#allocation5] sm:$0xf]
        %v334 = vld [vmem:[#allocation5 + $0x4] sm:$0xf]
        %v335 = vld [vmem:[#allocation5 + $0x8] sm:$0xf]
        %v336 = vld [vmem:[#allocation5 + $0xc] sm:$0xf]
        %v337 = vld [vmem:[#allocation5 + $0x10] sm:$0xf]
        %v338 = vld [vmem:[#allocation5 + $0x14] sm:$0xf]
        %v339 = vld [vmem:[#allocation5 + $0x18] sm:$0xf]
        %v340 = vld [vmem:[#allocation5 + $0x1c] sm:$0xf]
        %v343 = vunpack.c.l.b16 %v331
        %v344 = vunpack.c.l.b16 %v332
        %v345 = vpack.c.b16 %v344, %v343
        %v354 = vunpack.c.l.b16 %v333
        %v355 = vunpack.c.l.b16 %v334
        %v356 = vunpack.c.l.b16 %v335
        %v357 = vunpack.c.l.b16 %v336
        %v358 = vunpack.c.l.b16 %v337
        %v359 = vunpack.c.l.b16 %v338
        %v360 = vunpack.c.l.b16 %v339
        %v361 = vunpack.c.l.b16 %v340
        %v362 = vpack.c.b16 %v355, %v354
        %v363 = vpack.c.b16 %v357, %v356
        %v364 = vpack.c.b16 %v359, %v358
        %v365 = vpack.c.b16 %v361, %v360
        %vm370 = vcmask 523264
        %v372 = vsel %vm370, %v345, 0
        %374 = vmatpush.bf16.msra.mxu0 0
        %375 = vmatpush.bf16.msra.mxu0 0
        %376 = vmatpush.bf16.msra.mxu0 0
        %377 = vmatpush.bf16.msra.mxu0 0
        %378 = vmatpush.bf16.msra.mxu0 %v365
        %379 = vmatpush.bf16.msra.mxu0 %v364
        %380 = vmatpush.bf16.msra.mxu0 %v363
        %381 = vmatpush.bf16.msra.mxu0 %v362
        %382 = vmatmul.bf16.gmra.mxu0 %v372
        %v383 = vpop.f32.mrf.mxu0
        %v384 = vadd.f32 0.0, %v383
        %v385 = vpop.f32.mrf.mxu0
        %v386 = vadd.f32 0.0, %v385
        %387 = vdwg.mxu0
        %s388 = scalar_lea.vmem [#allocation5], 32
        %v389 = vld [vmem:[%s388] sm:$0xf]
        %v390 = vld [vmem:[%s388 + $0x4] sm:$0xf]
        %v391 = vld [vmem:[%s388 + $0x8] sm:$0xf]
        %v392 = vld [vmem:[%s388 + $0xc] sm:$0xf]
        %v393 = vld [vmem:[%s388 + $0x10] sm:$0xf]
        %v394 = vld [vmem:[%s388 + $0x14] sm:$0xf]
        %v395 = vld [vmem:[%s388 + $0x18] sm:$0xf]
        %v396 = vld [vmem:[%s388 + $0x1c] sm:$0xf]
        %v405 = vunpack.c.l.b16 %v389
        %v406 = vunpack.c.l.b16 %v390
        %v407 = vunpack.c.l.b16 %v391
        %v408 = vunpack.c.l.b16 %v392
        %v409 = vunpack.c.l.b16 %v393
        %v410 = vunpack.c.l.b16 %v394
        %v411 = vunpack.c.l.b16 %v395
        %v412 = vunpack.c.l.b16 %v396
        %v413 = vpack.c.b16 %v406, %v405
        %v414 = vpack.c.b16 %v408, %v407
        %v415 = vpack.c.b16 %v410, %v409
        %v416 = vpack.c.b16 %v412, %v411
        %421 = vmatpush.bf16.msra.mxu0 0
        %422 = vmatpush.bf16.msra.mxu0 0
        %423 = vmatpush.bf16.msra.mxu0 0
        %424 = vmatpush.bf16.msra.mxu0 0
        %425 = vmatpush.bf16.msra.mxu0 %v416
        %426 = vmatpush.bf16.msra.mxu0 %v415
        %427 = vmatpush.bf16.msra.mxu0 %v414
        %428 = vmatpush.bf16.msra.mxu0 %v413
        %429 = vmatmul.bf16.gmra.mxu0 %v372
        %v430 = vpop.f32.mrf.mxu0
        %v431 = vadd.f32 0.0, %v430
        %v432 = vpop.f32.mrf.mxu0
        %v433 = vadd.f32 0.0, %v432
        %434 = vdwg.mxu0
        %s435 = scalar_lea.vmem [#allocation5], 64
        %v436 = vld [vmem:[%s435] sm:$0xf]
        %v437 = vld [vmem:[%s435 + $0x4] sm:$0xf]
        %v438 = vld [vmem:[%s435 + $0x8] sm:$0xf]
        %v439 = vld [vmem:[%s435 + $0xc] sm:$0xf]
        %v440 = vld [vmem:[%s435 + $0x10] sm:$0xf]
        %v441 = vld [vmem:[%s435 + $0x14] sm:$0xf]
        %v442 = vld [vmem:[%s435 + $0x18] sm:$0xf]
        %v443 = vld [vmem:[%s435 + $0x1c] sm:$0xf]
        %v452 = vunpack.c.l.b16 %v436
        %v453 = vunpack.c.l.b16 %v437
        %v454 = vunpack.c.l.b16 %v438
        %v455 = vunpack.c.l.b16 %v439
        %v456 = vunpack.c.l.b16 %v440
        %v457 = vunpack.c.l.b16 %v441
        %v458 = vunpack.c.l.b16 %v442
        %v459 = vunpack.c.l.b16 %v443
        %v460 = vpack.c.b16 %v453, %v452
        %v461 = vpack.c.b16 %v455, %v454
        %v462 = vpack.c.b16 %v457, %v456
        %v463 = vpack.c.b16 %v459, %v458
        %468 = vmatpush.bf16.msra.mxu0 0
        %469 = vmatpush.bf16.msra.mxu0 0
        %470 = vmatpush.bf16.msra.mxu0 0
        %471 = vmatpush.bf16.msra.mxu0 0
        %472 = vmatpush.bf16.msra.mxu0 %v463
        %473 = vmatpush.bf16.msra.mxu0 %v462
        %474 = vmatpush.bf16.msra.mxu0 %v461
        %475 = vmatpush.bf16.msra.mxu0 %v460
        %476 = vmatmul.bf16.gmra.mxu0 %v372
        %v477 = vpop.f32.mrf.mxu0
        %v478 = vadd.f32 0.0, %v477
        %v479 = vpop.f32.mrf.mxu0
        %v480 = vadd.f32 0.0, %v479
        %481 = vdwg.mxu0
        %vm484 = vcmask 1040384
        %v485 = vrot.slane %v384, 7
        %v486 = vrot.slane %v386, 7
        %v487 = vsel %vm484, %v485, %v486
        %v490 = vsel %vm484, 0.0, %v485
        %v491 = vadd.f32 %v490, %v431
        %v492 = vadd.f32 %v487, %v433
        %vm495 = vcmask 1046528
        %v496 = vrot.slane %v478, 1
        %v497 = vrot.slane %v480, 1
        %v498 = vsel %vm495, %v496, %v497
        %v501 = vsel %vm495, %v497, 0.0
        %v502 = vadd.f32 %v491, %v498
        %v503 = vadd.f32 %v492, %v501
        %v504 = vld [vmem:[%s2] sm:$0x1]
        %v506 = vperm.slane %v504, 0
        %v508 = vadd.f32 %v502, %v506
        %v509 = vadd.f32 %v503, %v506
        %vm510 = vcmp.gt.f32.partialorder %v508, 0.0
        %vm511 = vcmp.gt.f32.partialorder %v509, 0.0
        %v512 = vmul.f32 %v508, 0.2
        %v513 = vmul.f32 %v509, 0.2
        %v514 = vsel %vm510, %v508, %v512
        %v515 = vsel %vm511, %v509, %v513
        %v516 = vpack.c.bf16 %v514, %v514
        %v517 = vpack.c.bf16 %v515, %v515
        %v518 = vld [vmem:[#allocation7] sm:$0xf]
        %v519 = vld [vmem:[#allocation7 + $0x4] sm:$0xf]
        %v520 = vld [vmem:[#allocation7 + $0x8] sm:$0xf]
        %v521 = vld [vmem:[#allocation7 + $0xc] sm:$0xf]
        %v522 = vld [vmem:[#allocation7 + $0x10] sm:$0xf]
        %v523 = vld [vmem:[#allocation7 + $0x14] sm:$0xf]
        %v524 = vld [vmem:[#allocation7 + $0x18] sm:$0xf]
        %v525 = vld [vmem:[#allocation7 + $0x1c] sm:$0xf]
        %v528 = vunpack.c.l.b16 %v516
        %v529 = vunpack.c.l.b16 %v517
        %v530 = vpack.c.b16 %v529, %v528
        %v539 = vunpack.c.l.b16 %v518
        %v540 = vunpack.c.l.b16 %v519
        %v541 = vunpack.c.l.b16 %v520
        %v542 = vunpack.c.l.b16 %v521
        %v543 = vunpack.c.l.b16 %v522
        %v544 = vunpack.c.l.b16 %v523
        %v545 = vunpack.c.l.b16 %v524
        %v546 = vunpack.c.l.b16 %v525
        %v547 = vpack.c.b16 %v540, %v539
        %v548 = vpack.c.b16 %v542, %v541
        %v549 = vpack.c.b16 %v544, %v543
        %v550 = vpack.c.b16 %v546, %v545
        %v556 = vsel %vm370, %v530, 0
        %558 = vmatpush.bf16.msra.mxu0 0
        %559 = vmatpush.bf16.msra.mxu0 0
        %560 = vmatpush.bf16.msra.mxu0 0
        %561 = vmatpush.bf16.msra.mxu0 0
        %562 = vmatpush.bf16.msra.mxu0 %v550
        %563 = vmatpush.bf16.msra.mxu0 %v549
        %564 = vmatpush.bf16.msra.mxu0 %v548
        %565 = vmatpush.bf16.msra.mxu0 %v547
        %566 = vmatmul.bf16.gmra.mxu0 %v556
        %v567 = vpop.f32.mrf.mxu0
        %v568 = vadd.f32 0.0, %v567
        %v569 = vpop.f32.mrf.mxu0
        %v570 = vadd.f32 0.0, %v569
        %571 = vdwg.mxu0
        %s572 = scalar_lea.vmem [#allocation7], 32
        %v573 = vld [vmem:[%s572] sm:$0xf]
        %v574 = vld [vmem:[%s572 + $0x4] sm:$0xf]
        %v575 = vld [vmem:[%s572 + $0x8] sm:$0xf]
        %v576 = vld [vmem:[%s572 + $0xc] sm:$0xf]
        %v577 = vld [vmem:[%s572 + $0x10] sm:$0xf]
        %v578 = vld [vmem:[%s572 + $0x14] sm:$0xf]
        %v579 = vld [vmem:[%s572 + $0x18] sm:$0xf]
        %v580 = vld [vmem:[%s572 + $0x1c] sm:$0xf]
        %v589 = vunpack.c.l.b16 %v573
        %v590 = vunpack.c.l.b16 %v574
        %v591 = vunpack.c.l.b16 %v575
        %v592 = vunpack.c.l.b16 %v576
        %v593 = vunpack.c.l.b16 %v577
        %v594 = vunpack.c.l.b16 %v578
        %v595 = vunpack.c.l.b16 %v579
        %v596 = vunpack.c.l.b16 %v580
        %v597 = vpack.c.b16 %v590, %v589
        %v598 = vpack.c.b16 %v592, %v591
        %v599 = vpack.c.b16 %v594, %v593
        %v600 = vpack.c.b16 %v596, %v595
        %605 = vmatpush.bf16.msra.mxu0 0
        %606 = vmatpush.bf16.msra.mxu0 0
        %607 = vmatpush.bf16.msra.mxu0 0
        %608 = vmatpush.bf16.msra.mxu0 0
        %609 = vmatpush.bf16.msra.mxu0 %v600
        %610 = vmatpush.bf16.msra.mxu0 %v599
        %611 = vmatpush.bf16.msra.mxu0 %v598
        %612 = vmatpush.bf16.msra.mxu0 %v597
        %613 = vmatmul.bf16.gmra.mxu0 %v556
        %v614 = vpop.f32.mrf.mxu0
        %v615 = vadd.f32 0.0, %v614
        %v616 = vpop.f32.mrf.mxu0
        %v617 = vadd.f32 0.0, %v616
        %618 = vdwg.mxu0
        %s619 = scalar_lea.vmem [#allocation7], 64
        %v620 = vld [vmem:[%s619] sm:$0xf]
        %v621 = vld [vmem:[%s619 + $0x4] sm:$0xf]
        %v622 = vld [vmem:[%s619 + $0x8] sm:$0xf]
        %v623 = vld [vmem:[%s619 + $0xc] sm:$0xf]
        %v624 = vld [vmem:[%s619 + $0x10] sm:$0xf]
        %v625 = vld [vmem:[%s619 + $0x14] sm:$0xf]
        %v626 = vld [vmem:[%s619 + $0x18] sm:$0xf]
        %v627 = vld [vmem:[%s619 + $0x1c] sm:$0xf]
        %v636 = vunpack.c.l.b16 %v620
        %v637 = vunpack.c.l.b16 %v621
        %v638 = vunpack.c.l.b16 %v622
        %v639 = vunpack.c.l.b16 %v623
        %v640 = vunpack.c.l.b16 %v624
        %v641 = vunpack.c.l.b16 %v625
        %v642 = vunpack.c.l.b16 %v626
        %v643 = vunpack.c.l.b16 %v627
        %v644 = vpack.c.b16 %v637, %v636
        %v645 = vpack.c.b16 %v639, %v638
        %v646 = vpack.c.b16 %v641, %v640
        %v647 = vpack.c.b16 %v643, %v642
        %652 = vmatpush.bf16.msra.mxu0 0
        %653 = vmatpush.bf16.msra.mxu0 0
        %654 = vmatpush.bf16.msra.mxu0 0
        %655 = vmatpush.bf16.msra.mxu0 0
        %656 = vmatpush.bf16.msra.mxu0 %v647
        %657 = vmatpush.bf16.msra.mxu0 %v646
        %658 = vmatpush.bf16.msra.mxu0 %v645
        %659 = vmatpush.bf16.msra.mxu0 %v644
        %660 = vmatmul.bf16.gmra.mxu0 %v556
        %v661 = vpop.f32.mrf.mxu0
        %v662 = vadd.f32 0.0, %v661
        %v663 = vpop.f32.mrf.mxu0
        %v664 = vadd.f32 0.0, %v663
        %665 = vdwg.mxu0
        %v668 = vrot.slane %v568, 7
        %v669 = vrot.slane %v570, 7
        %v670 = vsel %vm484, %v668, %v669
        %v673 = vsel %vm484, 0.0, %v668
        %v674 = vadd.f32 %v673, %v615
        %v675 = vadd.f32 %v670, %v617
        %v678 = vrot.slane %v662, 1
        %v679 = vrot.slane %v664, 1
        %v680 = vsel %vm495, %v678, %v679
        %v683 = vsel %vm495, %v679, 0.0
        %v684 = vadd.f32 %v674, %v680
        %v685 = vadd.f32 %v675, %v683
        %v686 = vld [vmem:[%s4] sm:$0x1]
        %v688 = vperm.slane %v686, 0
        %v690 = vadd.f32 %v684, %v688
        %v691 = vadd.f32 %v685, %v688
        %v692 = vpack.c.bf16 %v324, %v323
        %v693 = vld [vmem:[#allocation8] sm:$0xf]
        %v694 = vld [vmem:[#allocation8 + $0x4] sm:$0xf]
        %v695 = vld [vmem:[#allocation8 + $0x8] sm:$0xf]
        %v696 = vld [vmem:[#allocation8 + $0xc] sm:$0xf]
        %v697 = vld [vmem:[#allocation8 + $0x10] sm:$0xf]
        %v698 = vld [vmem:[#allocation8 + $0x14] sm:$0xf]
        %v699 = vld [vmem:[#allocation8 + $0x18] sm:$0xf]
        %v700 = vld [vmem:[#allocation8 + $0x1c] sm:$0xf]
        %v709 = vunpack.c.l.b16 %v693
        %v710 = vunpack.c.l.b16 %v694
        %v711 = vunpack.c.l.b16 %v695
        %v712 = vunpack.c.l.b16 %v696
        %v713 = vunpack.c.l.b16 %v697
        %v714 = vunpack.c.l.b16 %v698
        %v715 = vunpack.c.l.b16 %v699
        %v716 = vunpack.c.l.b16 %v700
        %v717 = vpack.c.b16 %v710, %v709
        %v718 = vpack.c.b16 %v712, %v711
        %v719 = vpack.c.b16 %v714, %v713
        %v720 = vpack.c.b16 %v716, %v715
        %v726 = vsel %vm370, %v692, 0
        %728 = vmatpush.bf16.msra.mxu0 0
        %729 = vmatpush.bf16.msra.mxu0 0
        %730 = vmatpush.bf16.msra.mxu0 0
        %731 = vmatpush.bf16.msra.mxu0 0
        %732 = vmatpush.bf16.msra.mxu0 %v720
        %733 = vmatpush.bf16.msra.mxu0 %v719
        %734 = vmatpush.bf16.msra.mxu0 %v718
        %735 = vmatpush.bf16.msra.mxu0 %v717
        %736 = vmatmul.bf16.gmra.mxu0 %v726
        %v737 = vpop.f32.mrf.mxu0
        %v738 = vadd.f32 0.0, %v737
        %v739 = vpop.f32.mrf.mxu0
        %v740 = vadd.f32 0.0, %v739
        %741 = vdwg.mxu0
        %v742 = vmul.f32 %v690, 0.1
        %v743 = vmul.f32 %v691, 0.1
        %v744 = vadd.f32 %v738, %v742
        %v745 = vadd.f32 %v740, %v743
        %746 = vst [vmem:[%s321] sm:$0xff] %v744
        %747 = vst [vmem:[%s321 + $0x8] sm:$0xff] %v745
        %s748 = sand.u32 %s164, 1
        %s749 = scalar_lea.sflag [#allocation4], %s748
        %s750 = sand.u32 %s164, 1
        %s751 = smul.addr %s750, 16
        %s752 = scalar_lea.vmem [#allocation10], %s751
        // Predicated region
        $region61: #{tpu_custom_call.1} parent=43 // pred_check
          %p753 = pneg %p174
        $region62: #{tpu_custom_call.1} parent=43 // pred_check_branch
          %755 = sbr.rel (%p753) target = $region64
        $region63: #{tpu_custom_call.1} parent=43 // pred_region
          %757 = vsyncadd %s749, 0
          %s758 = smul.addr %s25, 2
          %s759 = smul.addr %s758, 8
          %s760 = scalar_lea.hbm %s6, %s759
          %s761 = sshll.u32 %s752, 4
          %s762 = int_to_ptr.vmem [resolvable:$true] %s761
          %s763 = sshll.u32 %s760, 4
          %s764 = int_to_ptr.hbm [resolvable:$true] %s763
          %769 = dma.vmem_to_hbm [thread:$0]  %s762, 256, %s764, %s749, 128, 128, 8
        $region64: #{tpu_custom_call.1} parent=43 // pred_fallthru
          _
      $region44: #{tpu_custom_call.1} parent=5 // pred_fallthru
        _
      %p770 = scmp.le.s32.totalorder 2, %s20
      // Predicated region
      $region65: #{tpu_custom_call.1} parent=5 // pred_check
        %p771 = pneg %p770
      $region66: #{tpu_custom_call.1} parent=5 // pred_check_branch
        %773 = sbr.rel (%p771) target = $region68
      $region67: #{tpu_custom_call.1} parent=5 // pred_region
        %s774 = ssub.s32 %s20, 2
        // Predicated region
        $region69: #{tpu_custom_call.1} parent=67 // pred_check
          %p775 = pneg %p180
        $region70: #{tpu_custom_call.1} parent=67 // pred_check_branch
          %777 = sbr.rel (%p775) target = $region72
        $region71: #{tpu_custom_call.1} parent=67 // pred_region
          %s778 = sand.u32 %s165, 1
          %s779 = scalar_lea.sflag [#allocation4], %s778
          %s780 = sand.u32 %s165, 1
          %s781 = smul.addr %s780, 16
          %s782 = scalar_lea.vmem [#allocation10], %s781
          %784 = dma.done %s779, 256
        $region72: #{tpu_custom_call.1} parent=67 // pred_fallthru
          _
      $region68: #{tpu_custom_call.1} parent=5 // pred_fallthru
        _
    $region6: #{tpu_custom_call.1} parent=1 // loop_footer
      %s24 = sadd.s32 1, %s20
    $region7: #{tpu_custom_call.1} parent=1 // loop_footer_branch
      %19 = sbr.rel target = $region3
    $region8: #{tpu_custom_call.1} parent=1 // loop_exit
      _
    %785 = vsyncpa [#allocation3], 1
    %s786 = scalar_lea.sflag [#allocation3], 1
    %787 = vsyncpa %s786, 1
    %788 = vsyncpa [#allocation6], 1
    %789 = vsyncpa [#allocation9], 1
    %790 = vsyncpa [#allocation4], 1
    %s791 = scalar_lea.sflag [#allocation4], 1
    %792 = vsyncpa %s791, 1

</llo_original>
